<compile_context>
chip_gen: v7x
topology: tpu7x:2x2x1
jax: 0.10.0
libtpu: 0.0.40
codegen_flags: <defaults>
</compile_context>

<pallas_src>
import functools

import jax
import jax.numpy as jnp
from jax import lax
from jax.experimental import pallas as pl
from jax.experimental.pallas import tpu as pltpu


def _round_up(x, m):
    return (x + m - 1) // m * m


def _self_attention_kernel(x_ref, m_ref, wv_ref, gamma_ref, o_ref,
                           xa_ref, t_ref, v_ref, *,
                           n_valid, c_in, tq, mm_dtype, exp_dtype):
    """One (batch, query-tile) step.

    x_ref  : (1, C, Np) f32  -- input features (flattened spatial, lane-padded)
    m_ref  : (Cp, Cp)   f32  -- Wq_aug^T @ Wk_aug  (q/k 1x1 convs + biases folded)
    wv_ref : (Cp, Cp)   f32  -- [Wv | bv] rows + one "sum" row (denominator)
    gamma  : (1,)       f32  -- SMEM scalar
    o_ref  : (1, C, tq) f32  -- output tile (only real channels written)
    xa_ref : (Cp, Np)   f32  -- scratch: [x ; masked-ones row ; zero rows]
    t_ref  : (Cp, Np)   mm   -- scratch: M @ x_aug        (per batch element)
    v_ref  : (Cp, Np)   mm   -- scratch: Wv_aug @ x_aug   (per batch element)
    """
    qi = pl.program_id(1)
    np_ = xa_ref.shape[1]
    sum_row = c_in                              # ones / denominator row index

    # ---- per-batch-element, query-independent setup (first query tile only) ----
    @pl.when(qi == 0)
    def _build():
        # Pad rows/cols must be exactly 0 so they vanish inside the matmuls
        # (the folded weights are zero-padded too).
        xa_ref[...] = jnp.zeros_like(xa_ref)
        xa_ref[0:c_in, :] = x_ref[0]
        col = lax.broadcasted_iota(jnp.int32, (1, np_), 1)
        # Masked ones row: folds the conv biases into the matmuls and yields the
        # softmax denominator through wv's sum row; zero on padded key columns.
        xa_ref[sum_row:sum_row + 1, :] = (col < n_valid).astype(jnp.float32)

        xa = xa_ref[...].astype(mm_dtype)
        # Key-side projections, shared by every query tile of this batch element.
        t_ref[...] = lax.dot_general(
            m_ref[...].astype(mm_dtype), xa, (((1,), (0,)), ((), ())),
            preferred_element_type=jnp.float32).astype(t_ref.dtype)
        v_ref[...] = lax.dot_general(
            wv_ref[...].astype(mm_dtype), xa, (((1,), (0,)), ((), ())),
            preferred_element_type=jnp.float32).astype(v_ref.dtype)

    # ---- attention for this query tile ----
    q0 = pl.multiple_of(qi * tq, 128)
    q_aug = xa_ref[:, pl.ds(q0, tq)].astype(mm_dtype)             # (Cp, tq)

    # energy[i, j] = sum_c q_aug[c, i] * t[c, j]   (== q^T k, biases folded)
    energy = lax.dot_general(q_aug, t_ref[...], (((0,), (0,)), ((), ())),
                             preferred_element_type=jnp.float32)  # (tq, Np)

    # Unnormalized softmax.  No padding mask needed: padded key columns have
    # energy == 0 and v_aug == 0 (incl. the sum row), so they add nothing.
    m_row = jnp.max(energy, axis=-1, keepdims=True)               # (tq, 1)
    p = jnp.exp((energy - m_row).astype(exp_dtype))               # (tq, Np)

    # out_aug[c, i] = sum_j v_aug[c, j] * p[i, j]   (== v @ att^T, no transpose)
    out_aug = lax.dot_general(v_ref[...], p.astype(mm_dtype),
                              (((1,), (1,)), ((), ())),
                              preferred_element_type=jnp.float32)  # (Cp, tq)

    num = out_aug[0:c_in, :]                                       # (C, tq)
    denom = out_aug[sum_row:sum_row + 1, :]                        # (1, tq)
    # Clamp guards the (unreachable in practice) all-underflow corner case now
    # that the padding mask is gone; approx reciprocal runs on the EUP.
    inv = pl.reciprocal(jnp.maximum(denom, jnp.float32(1e-30)), approx=True)

    x_res = x_ref[0, :, pl.ds(q0, tq)]                             # (C, tq) f32
    o_ref[0] = (gamma_ref[0] * (num * inv) + x_res).astype(o_ref.dtype)


def self_attention_pallas(x_nchw, wq, bq, wk, bk, wv, bv, gamma, *,
                          mm_dtype=jnp.bfloat16, exp_dtype=None):
    """x_nchw: (B, C, W, H) float32.  Returns (B, C, W, H) float32."""
    B, C, W, H = x_nchw.shape
    N = W * H
    Np = _round_up(N, 128)
    if exp_dtype is None:
        exp_dtype = mm_dtype          # bf16 exp on v6e/v7x; pass f32 for v5e
    mm_dtype = jnp.dtype(mm_dtype)
    exp_dtype = jnp.dtype(exp_dtype)

    Ca = C + 1
    sub = 16 if mm_dtype == jnp.dtype(jnp.bfloat16) else 8   # packed-row aligned
    Cp = _round_up(Ca, sub)

    # Query-tile size: lane-dense, divides Np; big enough to amortize the fixed
    # per-grid-step cost, small enough that (tq, Np) temporaries fit v7x VMEM.
    if Np % 512 == 0 and Np <= 8192:
        tq = 512
    elif Np % 256 == 0:
        tq = 256
    else:
        tq = 128
    nq = Np // tq

    f32 = jnp.float32
    x_flat = x_nchw.reshape(B, C, N).astype(f32)
    if Np != N:
        # Only the spatial dim is padded (and only when needed); the channel
        # padding + ones row are built in-kernel, so x takes one HBM round trip.
        x_flat = jnp.pad(x_flat, ((0, 0), (0, 0), (0, Np - N)))

    # Fold query/key 1x1 convs (+ biases):
    #   energy = (Wq x + bq)^T (Wk x + bk) = x_aug^T (Wq_aug^T Wk_aug) x_aug
    wq_aug = jnp.concatenate([wq.astype(f32), bq.reshape(-1, 1).astype(f32)], axis=1)
    wk_aug = jnp.concatenate([wk.astype(f32), bk.reshape(-1, 1).astype(f32)], axis=1)
    m_mat = jnp.pad(wq_aug.T @ wk_aug, ((0, Cp - Ca), (0, Cp - Ca)))       # (Cp, Cp)

    # Value 1x1 conv (+ bias) plus a "sum" row reproducing the masked ones row
    # of x_aug -> softmax denominator comes out of the same matmul.
    wv_aug = jnp.concatenate([wv.astype(f32), bv.reshape(-1, 1).astype(f32)], axis=1)
    sum_row_vec = jnp.zeros((1, Ca), f32).at[0, C].set(1.0)
    wv_aug = jnp.pad(jnp.concatenate([wv_aug, sum_row_vec], axis=0),
                     ((0, Cp - Ca), (0, Cp - Ca)))                          # (Cp, Cp)

    gamma1 = gamma.reshape(1).astype(f32)

    # VMEM budget: (tq, Np) softmax temporaries + resident key-side slabs + IO.
    mm_sz = mm_dtype.itemsize
    exp_sz = exp_dtype.itemsize
    est = (2 * C * Np * 4                       # x block, double-buffered
           + 2 * C * tq * 4                     # out block, double-buffered
           + 4 * Cp * Cp * 4                    # folded weights
           + Cp * Np * 4                        # x_aug scratch (f32)
           + 2 * Cp * Np * mm_sz                # t, v scratches
           + tq * Np * (4 + exp_sz + mm_sz)     # energy + p (+ matmul-dtype copy)
           + 4 * Cp * tq * 4)                   # q operand / out_aug / epilogue
    vmem_limit = int(min(96 * 1024 * 1024, max(32 * 1024 * 1024, 2 * est)))

    kernel = functools.partial(
        _self_attention_kernel, n_valid=N, c_in=C, tq=tq,
        mm_dtype=mm_dtype, exp_dtype=exp_dtype)

    out = pl.pallas_call(
        kernel,
        out_shape=jax.ShapeDtypeStruct((B, C, Np), jnp.float32),
        grid_spec=pltpu.PrefetchScalarGridSpec(
            num_scalar_prefetch=0,
            grid=(B, nq),
            in_specs=[
                pl.BlockSpec((1, C, Np), lambda b, q: (b, 0, 0)),   # x (resident over q)
                pl.BlockSpec((Cp, Cp), lambda b, q: (0, 0)),        # folded q/k matrix
                pl.BlockSpec((Cp, Cp), lambda b, q: (0, 0)),        # value weights (+sum row)
                pl.BlockSpec(memory_space=pltpu.MemorySpace.SMEM),  # gamma scalar
            ],
            out_specs=pl.BlockSpec((1, C, tq), lambda b, q: (b, 0, q)),
            scratch_shapes=[
                pltpu.VMEM((Cp, Np), jnp.float32),   # x_aug
                pltpu.VMEM((Cp, Np), mm_dtype),      # t = M @ x_aug
                pltpu.VMEM((Cp, Np), mm_dtype),      # v_aug = Wv_aug @ x_aug
            ],
        ),
        compiler_params=pltpu.CompilerParams(
            # Query axis carries the per-batch scratch build -> "arbitrary";
            # batch axis is "parallel" (megacore on v7x).
            dimension_semantics=("parallel", "arbitrary"),
            vmem_limit_bytes=vmem_limit,
        ),
    )(x_flat, m_mat, wv_aug, gamma1)

    if Np != N:
        out = out[:, :, :N]
    return out.reshape(B, C, W, H)


def self_attention_ref(x_nchw, wq, bq, wk, bk, wv, bv, gamma):
    """Pure-JAX reference mirroring the PyTorch forward."""
    B, C, W, H = x_nchw.shape
    N = W * H
    xf = x_nchw.reshape(B, C, N)
    q = jnp.einsum("oc,bcn->bon", wq, xf) + bq[None, :, None]
    k = jnp.einsum("oc,bcn->bon", wk, xf) + bk[None, :, None]
    v = jnp.einsum("oc,bcn->bon", wv, xf) + bv[None, :, None]
    energy = jnp.einsum("bci,bcj->bij", q, k)
    att = jax.nn.softmax(energy, axis=-1)
    out = jnp.einsum("bcj,bij->bci", v, att)
    out = gamma.reshape(()) * out + xf
    return out.reshape(B, C, W, H)


if __name__ == "__main__":
    # in_dim must be >= 10 so in_dim // 10 >= 1 (query/key channel count).
    B, C, W, H = 2, 20, 8, 8
    Cq = C // 10

    key = jax.random.PRNGKey(0)
    kx, kwq, kbq, kwk, kbk, kwv, kbv, kx2 = jax.random.split(key, 8)

    x = jax.random.normal(kx, (B, C, W, H), dtype=jnp.float32)
    wq = 0.1 * jax.random.normal(kwq, (Cq, C), dtype=jnp.float32)
    bq = 0.1 * jax.random.normal(kbq, (Cq,), dtype=jnp.float32)
    wk = 0.1 * jax.random.normal(kwk, (Cq, C), dtype=jnp.float32)
    bk = 0.1 * jax.random.normal(kbk, (Cq,), dtype=jnp.float32)
    wv = 0.1 * jax.random.normal(kwv, (C, C), dtype=jnp.float32)
    bv = 0.1 * jax.random.normal(kbv, (C,), dtype=jnp.float32)
    # PyTorch inits gamma to 0 (out == x); nonzero exercises the attention path.
    gamma = jnp.array([0.5], dtype=jnp.float32)

    ref = self_attention_ref(x, wq, bq, wk, bk, wv, bv, gamma)

    # f32 MXU/exp path (near-exact; only approx reciprocal deviates).
    out_f32 = self_attention_pallas(x, wq, bq, wk, bk, wv, bv, gamma,
                                    mm_dtype=jnp.float32)
    out_f32 = jax.block_until_ready(out_f32)
    assert out_f32.shape == (B, C, W, H)
    assert jnp.allclose(out_f32, ref, atol=2e-3, rtol=2e-3), "f32 path mismatch"

    # bf16 MXU + bf16 exp path (v6e/v7x); softmax max/accumulation stay f32.
    out_bf16 = self_attention_pallas(x, wq, bq, wk, bk, wv, bv, gamma,
                                     mm_dtype=jnp.bfloat16)
    out_bf16 = jax.block_until_ready(out_bf16)
    assert jnp.allclose(out_bf16, ref, atol=4e-2, rtol=4e-2), "bf16 path mismatch"

    # Larger spatial map: exercises the multi-query-tile path (nq > 1) and the
    # per-batch scratch carry across query tiles.
    W2 = H2 = 32
    x2 = jax.random.normal(kx2, (B, C, W2, H2), dtype=jnp.float32)
    ref2 = self_attention_ref(x2, wq, bq, wk, bk, wv, bv, gamma)
    out2 = self_attention_pallas(x2, wq, bq, wk, bk, wv, bv, gamma,
                                 mm_dtype=jnp.bfloat16)
    out2 = jax.block_until_ready(out2)
    assert jnp.allclose(out2, ref2, atol=4e-2, rtol=4e-2), "tiled bf16 path mismatch"

    print("KERNEL_OK")
</pallas_src>

<mosaic_0001>
module attributes {stable_mosaic.version = 11 : i64} {
  func.func @_self_attention_kernel(%arg0: i32, %arg1: i32, %arg2: memref<1x20x128xf32, #tpu.memory_space<vmem>>, %arg3: memref<24x24xf32, #tpu.memory_space<vmem>>, %arg4: memref<24x24xf32, #tpu.memory_space<vmem>>, %arg5: memref<1xf32, #tpu.memory_space<smem>>, %arg6: memref<1x20x128xf32, #tpu.memory_space<vmem>>, %arg7: memref<24x128xf32, #tpu.memory_space<vmem>>, %arg8: memref<24x128xf32, #tpu.memory_space<vmem>>, %arg9: memref<24x128xf32, #tpu.memory_space<vmem>>) attributes {dimension_semantics = [#tpu.dimension_semantics<parallel>, #tpu.dimension_semantics<arbitrary>], iteration_bounds = array<i64: 2, 1>, scalar_prefetch = 0 : i64, scratch_operands = 3 : i64, tpu.core_type = #tpu.core_type<tc>, window_params = [{transform_indices = @transform_0, window_bounds = array<i64: 1, 20, 128>}, {pipeline_mode = #tpu.pipeline_mode<synchronous>, transform_indices = @transform_1, window_bounds = array<i64: 24, 24>}, {pipeline_mode = #tpu.pipeline_mode<synchronous>, transform_indices = @transform_2, window_bounds = array<i64: 24, 24>}, {transform_indices = @transform_3, window_bounds = array<i64: 1>}, {transform_indices = @transform_4, window_bounds = array<i64: 1, 20, 128>}]} {
    %c0_i32 = arith.constant 0 : i32
    %0 = arith.cmpi eq, %arg1, %c0_i32 : i32
    %1 = arith.extui %0 : i1 to i32
    %c0_i32_0 = arith.constant 0 : i32
    %2 = arith.cmpi ne, %1, %c0_i32_0 : i32
    scf.if %2 {
      %cst_14 = arith.constant 0.000000e+00 : f32
      %33 = vector.broadcast %cst_14 : f32 to vector<24x128xf32>
      %c0_15 = arith.constant 0 : index
      %c0_16 = arith.constant 0 : index
      %34 = vector.load %arg7[%c0_15, %c0_16] : memref<24x128xf32, #tpu.memory_space<vmem>>, vector<24x128xf32>
      tpu.vector_store %arg7[%c0_15, %c0_16], %33 {strides = array<i32>} : memref<24x128xf32, #tpu.memory_space<vmem>>, vector<24x128xf32>,
      %c0_17 = arith.constant 0 : index
      %c0_18 = arith.constant 0 : index
      %c0_19 = arith.constant 0 : index
      %35 = vector.load %arg2[%c0_17, %c0_18, %c0_19] : memref<1x20x128xf32, #tpu.memory_space<vmem>>, vector<1x20x128xf32>
      %36 = vector.shape_cast %35 : vector<1x20x128xf32> to vector<20x128xf32>
      %c0_20 = arith.constant 0 : index
      %c0_21 = arith.constant 0 : index
      %37 = vector.load %arg7[%c0_20, %c0_21] : memref<24x128xf32, #tpu.memory_space<vmem>>, vector<20x128xf32>
      tpu.vector_store %arg7[%c0_20, %c0_21], %36 {strides = array<i32>} : memref<24x128xf32, #tpu.memory_space<vmem>>, vector<20x128xf32>,
      %38 = tpu.iota {dimensions = array<i32: 1>} : vector<1x128xi32>
      %c64_i32 = arith.constant 64 : i32
      %39 = vector.broadcast %c64_i32 : i32 to vector<1x128xi32>
      %40 = arith.cmpi slt, %38, %39 : vector<1x128xi32>
      %41 = arith.extui %40 : vector<1x128xi1> to vector<1x128xi32>
      %42 = arith.sitofp %41 : vector<1x128xi32> to vector<1x128xf32>
      %c20 = arith.constant 20 : index
      %c0_22 = arith.constant 0 : index
      %43 = vector.load %arg7[%c20, %c0_22] : memref<24x128xf32, #tpu.memory_space<vmem>>, vector<1x128xf32>
      tpu.vector_store %arg7[%c20, %c0_22], %42 {strides = array<i32>} : memref<24x128xf32, #tpu.memory_space<vmem>>, vector<1x128xf32>,
      %c0_23 = arith.constant 0 : index
      %c0_24 = arith.constant 0 : index
      %44 = vector.load %arg7[%c0_23, %c0_24] : memref<24x128xf32, #tpu.memory_space<vmem>>, vector<24x128xf32>
      %c0_25 = arith.constant 0 : index
      %c0_26 = arith.constant 0 : index
      %45 = vector.load %arg3[%c0_25, %c0_26] : memref<24x24xf32, #tpu.memory_space<vmem>>, vector<24x24xf32>
      %cst_27 = arith.constant dense<0.000000e+00> : vector<24x128xf32>
      %46 = tpu.matmul %45, %44, %cst_27 {dimension_numbers = #tpu.dot_dimension_numbers<[1], [0], [0], [1], [0, 0, 1, 1], [], []>} : vector<24x24xf32>, vector<24x128xf32>, vector<24x128xf32> -> vector<24x128xf32>
      %c0_28 = arith.constant 0 : index
      %c0_29 = arith.constant 0 : index
      %47 = vector.load %arg8[%c0_28, %c0_29] : memref<24x128xf32, #tpu.memory_space<vmem>>, vector<24x128xf32>
      tpu.vector_store %arg8[%c0_28, %c0_29], %46 {strides = array<i32>} : memref<24x128xf32, #tpu.memory_space<vmem>>, vector<24x128xf32>,
      %c0_30 = arith.constant 0 : index
      %c0_31 = arith.constant 0 : index
      %48 = vector.load %arg4[%c0_30, %c0_31] : memref<24x24xf32, #tpu.memory_space<vmem>>, vector<24x24xf32>
      %cst_32 = arith.constant dense<0.000000e+00> : vector<24x128xf32>
      %49 = tpu.matmul %48, %44, %cst_32 {dimension_numbers = #tpu.dot_dimension_numbers<[1], [0], [0], [1], [0, 0, 1, 1], [], []>} : vector<24x24xf32>, vector<24x128xf32>, vector<24x128xf32> -> vector<24x128xf32>
      %c0_33 = arith.constant 0 : index
      %c0_34 = arith.constant 0 : index
      %50 = vector.load %arg9[%c0_33, %c0_34] : memref<24x128xf32, #tpu.memory_space<vmem>>, vector<24x128xf32>
      tpu.vector_store %arg9[%c0_33, %c0_34], %49 {strides = array<i32>} : memref<24x128xf32, #tpu.memory_space<vmem>>, vector<24x128xf32>,
    } else {
    }
    %c128_i32 = arith.constant 128 : i32
    %3 = arith.muli %arg1, %c128_i32 : i32
    %4 = tpu.assume_multiple %3, 128 : i32
    %c0 = arith.constant 0 : index
    %5 = arith.index_cast %4 : i32 to index
    %6 = vector.load %arg7[%c0, %5] : memref<24x128xf32, #tpu.memory_space<vmem>>, vector<24x128xf32>
    %c0_1 = arith.constant 0 : index
    %c0_2 = arith.constant 0 : index
    %7 = vector.load %arg8[%c0_1, %c0_2] : memref<24x128xf32, #tpu.memory_space<vmem>>, vector<24x128xf32>
    %cst = arith.constant dense<0.000000e+00> : vector<128x128xf32>
    %8 = tpu.matmul %6, %7, %cst {dimension_numbers = #tpu.dot_dimension_numbers<[0], [0], [1], [1], [0, 1, 1, 1], [], []>} : vector<24x128xf32>, vector<24x128xf32>, vector<128x128xf32> -> vector<128x128xf32>
    %cst_3 = arith.constant dense<0xFF800000> : vector<128xf32>
    %9 = vector.multi_reduction <maximumf>, %8, %cst_3 [1] : vector<128x128xf32> to vector<128xf32>
    %10 = vector.shape_cast %9 : vector<128xf32> to vector<128x1xf32>
    %11 = vector.broadcast %10 : vector<128x1xf32> to vector<128x128xf32>
    %12 = arith.subf %8, %11 : vector<128x128xf32>
    %13 = math.exp %12 : vector<128x128xf32>
    %c0_4 = arith.constant 0 : index
    %c0_5 = arith.constant 0 : index
    %14 = vector.load %arg9[%c0_4, %c0_5] : memref<24x128xf32, #tpu.memory_space<vmem>>, vector<24x128xf32>
    %cst_6 = arith.constant dense<0.000000e+00> : vector<24x128xf32>
    %15 = tpu.matmul %14, %13, %cst_6 {dimension_numbers = #tpu.dot_dimension_numbers<[1], [1], [0], [0], [0, 0, 1, 0], [], []>} : vector<24x128xf32>, vector<128x128xf32>, vector<24x128xf32> -> vector<24x128xf32>
    %16 = vector.extract_strided_slice %15 {offsets = [0, 0], sizes = [20, 128], strides = [1, 1]} : vector<24x128xf32> to vector<20x128xf32>
    %17 = vector.extract_strided_slice %15 {offsets = [20, 0], sizes = [1, 128], strides = [1, 1]} : vector<24x128xf32> to vector<1x128xf32>
    %cst_7 = arith.constant 1.000000e-30 : f32
    %18 = vector.broadcast %cst_7 : f32 to vector<1x128xf32>
    %19 = arith.maximumf %17, %18 : vector<1x128xf32>
    %20 = tpu.reciprocal %19 {approx = true} : vector<1x128xf32> -> vector<1x128xf32>
    %c0_8 = arith.constant 0 : index
    %c0_9 = arith.constant 0 : index
    %21 = arith.index_cast %4 : i32 to index
    %22 = vector.load %arg2[%c0_8, %c0_9, %21] : memref<1x20x128xf32, #tpu.memory_space<vmem>>, vector<1x20x128xf32>
    %23 = vector.shape_cast %22 : vector<1x20x128xf32> to vector<20x128xf32>
    %c0_10 = arith.constant 0 : index
    %24 = memref.load %arg5[%c0_10] : memref<1xf32, #tpu.memory_space<smem>>
    %25 = vector.broadcast %20 : vector<1x128xf32> to vector<20x128xf32>
    %26 = arith.mulf %16, %25 : vector<20x128xf32>
    %27 = vector.broadcast %24 : f32 to vector<20x128xf32>
    %28 = arith.mulf %27, %26 : vector<20x128xf32>
    %29 = arith.addf %28, %23 : vector<20x128xf32>
    %c0_11 = arith.constant 0 : index
    %c0_12 = arith.constant 0 : index
    %c0_13 = arith.constant 0 : index
    %30 = vector.load %arg6[%c0_11, %c0_12, %c0_13] : memref<1x20x128xf32, #tpu.memory_space<vmem>>, vector<1x20x128xf32>
    %31 = vector.shape_cast %30 : vector<1x20x128xf32> to vector<20x128xf32>
    %32 = vector.shape_cast %29 : vector<20x128xf32> to vector<1x20x128xf32>
    tpu.vector_store %arg6[%c0_11, %c0_12, %c0_13], %32 {strides = array<i32>} : memref<1x20x128xf32, #tpu.memory_space<vmem>>, vector<1x20x128xf32>,
    return
  }
  func.func @transform_0(%arg0: i32, %arg1: i32) -> (i32, i32, i32) {
    %c0_i32 = arith.constant 0 : i32
    %c0_i32_0 = arith.constant 0 : i32
    %c0_i32_1 = arith.constant 0 : i32
    return %arg0, %c0_i32, %c0_i32_0 : i32, i32, i32
  }
  func.func @transform_1(%arg0: i32, %arg1: i32) -> (i32, i32) {
    %c0_i32 = arith.constant 0 : i32
    %c0_i32_0 = arith.constant 0 : i32
    %c0_i32_1 = arith.constant 0 : i32
    return %c0_i32, %c0_i32_0 : i32, i32
  }
  func.func @transform_2(%arg0: i32, %arg1: i32) -> (i32, i32) {
    %c0_i32 = arith.constant 0 : i32
    %c0_i32_0 = arith.constant 0 : i32
    %c0_i32_1 = arith.constant 0 : i32
    return %c0_i32, %c0_i32_0 : i32, i32
  }
  func.func @transform_3(%arg0: i32, %arg1: i32) -> i32 {
    %c0_i32 = arith.constant 0 : i32
    %c0_i32_0 = arith.constant 0 : i32
    return %c0_i32 : i32
  }
  func.func @transform_4(%arg0: i32, %arg1: i32) -> (i32, i32, i32) {
    %c0_i32 = arith.constant 0 : i32
    %c0_i32_0 = arith.constant 0 : i32
    return %arg0, %c0_i32, %arg1 : i32, i32, i32
  }
}

</mosaic_0001>

<llo_original>
// kernel: tpu_custom_call.1
$region0: #{tpu_custom_call.1}
  #allocation0 [shape = 'u32[]', space=smem, size = 0x4, offset = 0x4, fixed_abs, tag = 'smem constant byte address 0x4 - core index']
  #allocation1 [shape = 'u32[144,128]{1,0:T(1,128)}', space=vmem, size = 0x12000, scoped, tag = 'internal scratch']
  #allocation2 [shape = 'f32[24,128]{1,0:T(8,128)}', space=vmem, size = 0x3000, scoped, tag = 'scratch operand']
  #allocation3 [shape = 'f32[24,128]{1,0:T(8,128)}', space=vmem, size = 0x3000, scoped, tag = 'scratch operand']
  #allocation4 [shape = 'f32[24,128]{1,0:T(8,128)}', space=vmem, size = 0x3000, scoped, tag = 'scratch operand']
  #allocation5 [shape = 'f32[1]{0:T(128)S(6)}', space=smem, size = 0x200, scoped, tag = 'scoped memory for tpu_custom_call.1']
  %s0 = inlined_call_operand.vmem [shape: f32[2,20,128], index: 0, kind: input, shape index: {}]
  %s1 = inlined_call_operand.vmem [shape: f32[24,24], index: 1, kind: input, shape index: {}]
  %s2 = inlined_call_operand.vmem [shape: f32[24,24], index: 2, kind: input, shape index: {}]
  %s3 = inlined_call_operand.<no memory space> [shape: f32[1], index: 3, kind: input, shape index: {}]
  %s4 = inlined_call_operand.vmem [shape: f32[2,20,128], index: 4, kind: output, shape index: {}]
  %s5 = sld [smem:[#allocation0]]
  $region53: #{tpu_custom_call.1} parent=0
    _
  %s7 = ssub.s32 1, %s5
  %s8 = scalar_select 0, %s7, %s5
  %9 = sst [smem:[#allocation5]] %s3
  loop: start=0, step=1, limit=4
  $region2: #{tpu_custom_call.1} parent=0 // loop_pre_header
    _
  $region3: #{tpu_custom_call.1} parent=0 // loop_header
    %s11 = sphi 0, %s15
    %p12 = scmp.ge.s32.totalorder %s11, 4
    %s18 = sphi 0, %s30
    %s19 = sphi 0, %s26
    %s20 = sphi 0, %s18
    %s21 = sphi 0, %s19
    %s22 = sphi 0, %s20
    %s23 = sphi 0, %s21
    %s33 = sphi 0, %s35
    %s36 = sphi 0, %s33
    %s37 = sphi 0, %s36
    %s53 = sphi 0, %s37
    %s57 = sphi 0, %s57
    %s59 = sphi 0, %s57
    %s60 = sphi 0, %s59
    %s74 = sphi 0, %s60
    %s78 = sphi 0, %s78
    %s80 = sphi 0, %s78
    %s81 = sphi 0, %s80
    %s95 = sphi 0, %s81
    %s99 = sphi 0, %s99
    %s101 = sphi 0, %s99
    %s102 = sphi 0, %s101
    %s116 = sphi 0, %s102
    %s124 = sphi 0, %s126
    %s127 = sphi 0, %s124
    %s128 = sphi 0, %s127
    %s144 = sphi 0, %s128
  $region4: #{tpu_custom_call.1} parent=0 // loop_header_branch
    %14 = sbr.rel (%p12) target = $region8
  $region5: #{tpu_custom_call.1} parent=0 // loop_body
    %s16 = ssub.s32 %s11, 1
    %s17 = ssub.s32 %s11, 2
    %s24 = sadd.s32 1, %s19
    %p25 = scmp.ge.s32.totalorder %s24, 1
    %s26 = scalar_select %p25, 0, %s24
    %s27 = sadd.s32 1, %s18
    %s28 = scalar_select %p25, %s27, %s18
    %p29 = scmp.ge.s32.totalorder %s28, 2
    %s30 = scalar_select %p29, 0, %s28
    %s31 = ssub.s32 %s18, %s30
    %p32 = scmp.eq.s32.totalorder %s31, 0
    %s34 = sadd.s32 %s33, 1
    %s35 = scalar_select %p32, %s33, %s34
    %p38 = pneg %p32
    %p39 = scmp.eq.s32.totalorder %s11, 1
    %p40 = por %p38, %p39
    %p41 = scmp.ne.s32.totalorder %s33, %s36
    %p42 = scmp.eq.s32.totalorder %s11, 0
    %p43 = por %p41, %p42
    %p44 = scmp.ne.s32.totalorder %s33, %s36
    %p45 = scmp.eq.s32.totalorder %s16, 1
    %p46 = por %p44, %p45
    %p47 = scmp.ne.s32.totalorder %s36, %s37
    %p48 = scmp.eq.s32.totalorder %s16, 0
    %p49 = por %p47, %p48
    %p50 = scmp.ne.s32.totalorder %s36, %s37
    %p51 = scmp.eq.s32.totalorder %s17, 1
    %p52 = por %p50, %p51
    %p54 = scmp.ne.s32.totalorder %s37, %s53
    %p55 = scmp.eq.s32.totalorder %s17, 0
    %p56 = por %p54, %p55
    %s58 = sadd.s32 %s57, 1
    %p61 = scmp.eq.s32.totalorder %s11, 1
    %p62 = scmp.ne.s32.totalorder %s57, %s59
    %p63 = scmp.eq.s32.totalorder %s11, 0
    %p64 = por %p62, %p63
    %p65 = scmp.ne.s32.totalorder %s57, %s59
    %p66 = scmp.eq.s32.totalorder %s16, 1
    %p67 = por %p65, %p66
    %p68 = scmp.ne.s32.totalorder %s59, %s60
    %p69 = scmp.eq.s32.totalorder %s16, 0
    %p70 = por %p68, %p69
    %p71 = scmp.ne.s32.totalorder %s59, %s60
    %p72 = scmp.eq.s32.totalorder %s17, 1
    %p73 = por %p71, %p72
    %p75 = scmp.ne.s32.totalorder %s60, %s74
    %p76 = scmp.eq.s32.totalorder %s17, 0
    %p77 = por %p75, %p76
    %s79 = sadd.s32 %s78, 1
    %p82 = scmp.eq.s32.totalorder %s11, 1
    %p83 = scmp.ne.s32.totalorder %s78, %s80
    %p84 = scmp.eq.s32.totalorder %s11, 0
    %p85 = por %p83, %p84
    %p86 = scmp.ne.s32.totalorder %s78, %s80
    %p87 = scmp.eq.s32.totalorder %s16, 1
    %p88 = por %p86, %p87
    %p89 = scmp.ne.s32.totalorder %s80, %s81
    %p90 = scmp.eq.s32.totalorder %s16, 0
    %p91 = por %p89, %p90
    %p92 = scmp.ne.s32.totalorder %s80, %s81
    %p93 = scmp.eq.s32.totalorder %s17, 1
    %p94 = por %p92, %p93
    %p96 = scmp.ne.s32.totalorder %s81, %s95
    %p97 = scmp.eq.s32.totalorder %s17, 0
    %p98 = por %p96, %p97
    %s100 = sadd.s32 %s99, 1
    %p103 = scmp.eq.s32.totalorder %s11, 1
    %p104 = scmp.ne.s32.totalorder %s99, %s101
    %p105 = scmp.eq.s32.totalorder %s11, 0
    %p106 = por %p104, %p105
    %p107 = scmp.ne.s32.totalorder %s99, %s101
    %p108 = scmp.eq.s32.totalorder %s16, 1
    %p109 = por %p107, %p108
    %p110 = scmp.ne.s32.totalorder %s101, %s102
    %p111 = scmp.eq.s32.totalorder %s16, 0
    %p112 = por %p110, %p111
    %p113 = scmp.ne.s32.totalorder %s101, %s102
    %p114 = scmp.eq.s32.totalorder %s17, 1
    %p115 = por %p113, %p114
    %p117 = scmp.ne.s32.totalorder %s102, %s116
    %p118 = scmp.eq.s32.totalorder %s17, 0
    %p119 = por %p117, %p118
    %s120 = ssub.s32 %s18, %s30
    %s121 = ssub.s32 %s19, %s26
    %s122 = sor.u32 %s120, %s121
    %p123 = scmp.eq.s32.totalorder %s122, 0
    %s125 = sadd.s32 %s124, 1
    %s126 = scalar_select %p123, %s124, %s125
    %p129 = pneg %p123
    %p130 = scmp.eq.s32.totalorder %s11, 1
    %p131 = por %p129, %p130
    %p132 = scmp.ne.s32.totalorder %s124, %s127
    %p133 = scmp.eq.s32.totalorder %s11, 0
    %p134 = por %p132, %p133
    %p135 = scmp.ne.s32.totalorder %s124, %s127
    %p136 = scmp.eq.s32.totalorder %s16, 1
    %p137 = por %p135, %p136
    %p138 = scmp.ne.s32.totalorder %s127, %s128
    %p139 = scmp.eq.s32.totalorder %s16, 0
    %p140 = por %p138, %p139
    %p141 = scmp.ne.s32.totalorder %s127, %s128
    %p142 = scmp.eq.s32.totalorder %s17, 1
    %p143 = por %p141, %p142
    %p145 = scmp.ne.s32.totalorder %s128, %s144
    %p146 = scmp.eq.s32.totalorder %s17, 0
    %p147 = por %p145, %p146
    %p148 = scmp.le.s32.totalorder 1, %s11
    %p149 = scmp.lt.s32.totalorder %s11, 3
    %p150 = pnand %p148, %p149
    %p151 = pneg %p150
    // Predicated region
    $region9: #{tpu_custom_call.1} parent=5 // pred_check
      _
    $region10: #{tpu_custom_call.1} parent=5 // pred_check_branch
      %153 = sbr.rel (%p150) target = $region12
    $region11: #{tpu_custom_call.1} parent=5 // pred_region
      %s154 = ssub.s32 %s11, 1
      // Predicated region
      $region13: #{tpu_custom_call.1} parent=11 // pred_check
        %p155 = pneg %p70
      $region14: #{tpu_custom_call.1} parent=11 // pred_check_branch
        %157 = sbr.rel (%p155) target = $region16
      $region15: #{tpu_custom_call.1} parent=11 // pred_region
        _
      $region16: #{tpu_custom_call.1} parent=11 // pred_fallthru
        _
      // Predicated region
      $region17: #{tpu_custom_call.1} parent=11 // pred_check
        %p158 = pneg %p91
      $region18: #{tpu_custom_call.1} parent=11 // pred_check_branch
        %160 = sbr.rel (%p158) target = $region20
      $region19: #{tpu_custom_call.1} parent=11 // pred_region
        _
      $region20: #{tpu_custom_call.1} parent=11 // pred_fallthru
        _
      // Predicated region
      $region21: #{tpu_custom_call.1} parent=11 // pred_check
        %p161 = pneg %p112
      $region22: #{tpu_custom_call.1} parent=11 // pred_check_branch
        %163 = sbr.rel (%p161) target = $region24
      $region23: #{tpu_custom_call.1} parent=11 // pred_region
        _
      $region24: #{tpu_custom_call.1} parent=11 // pred_fallthru
        _
    $region12: #{tpu_custom_call.1} parent=5 // pred_fallthru
      _
    %p164 = scmp.lt.s32.totalorder %s11, 2
    // Predicated region
    $region25: #{tpu_custom_call.1} parent=5 // pred_check
      %p165 = pneg %p164
    $region26: #{tpu_custom_call.1} parent=5 // pred_check_branch
      %167 = sbr.rel (%p165) target = $region28
    $region27: #{tpu_custom_call.1} parent=5 // pred_region
      // Predicated region
      $region29: #{tpu_custom_call.1} parent=27 // pred_check
        %p168 = pneg %p43
      $region30: #{tpu_custom_call.1} parent=27 // pred_check_branch
        %170 = sbr.rel (%p168) target = $region32
      $region31: #{tpu_custom_call.1} parent=27 // pred_region
        %p171 = scmp.lt.s32.totalorder %s18, 1
        %s172 = scalar_select %p171, %s18, 1
        %s173 = smul.addr %s172, 3
        %s174 = smul.addr %s173, 8
        %s175 = scalar_lea.vmem %s0, %s174
      $region32: #{tpu_custom_call.1} parent=27 // pred_fallthru
        _
    $region28: #{tpu_custom_call.1} parent=5 // pred_fallthru
      _
    %p176 = scmp.le.s32.totalorder 1, %s11
    %p177 = scmp.lt.s32.totalorder %s11, 3
    %p178 = pnand %p176, %p177
    %p179 = pneg %p178
    // Predicated region
    $region33: #{tpu_custom_call.1} parent=5 // pred_check
      _
    $region34: #{tpu_custom_call.1} parent=5 // pred_check_branch
      %181 = sbr.rel (%p178) target = $region36
    $region35: #{tpu_custom_call.1} parent=5 // pred_region
      %s182 = ssub.s32 %s11, 1
      %p183 = scmp.lt.s32.totalorder %s20, 1
      %s184 = scalar_select %p183, %s20, 1
      %s185 = smul.addr %s184, 3
      %s186 = smul.addr %s185, 8
      %s187 = scalar_lea.vmem %s0, %s186
      %p188 = pneg %p49
      %p189 = pneg %p46
      %p190 = pneg %p70
      %p191 = pneg %p67
      %p192 = pneg %p91
      %p193 = pneg %p88
      %p194 = pneg %p112
      %p195 = pneg %p109
      %p196 = pneg %p140
      %p197 = pneg %p137
      %p198 = scmp.lt.s32.totalorder %s20, 1
      %s199 = scalar_select %p198, %s20, 1
      %p200 = scmp.lt.s32.totalorder %s21, 0
      %s201 = scalar_select %p200, %s21, 0
      %s202 = smul.addr %s199, 3
      %s203 = sadd.s32 %s201, %s202
      %s204 = smul.addr %s203, 8
      %s205 = scalar_lea.vmem %s4, %s204
      %p206 = scmp.lt.s32.totalorder %s20, 1
      %s207 = scalar_select %p206, %s20, 1
      %s208 = smul.addr %s207, 3
      %s209 = smul.addr %s208, 8
      %s210 = scalar_lea.vmem %s0, %s209
      %p211 = scmp.lt.s32.totalorder %s20, 1
      %s212 = scalar_select %p211, %s20, 1
      %p213 = scmp.lt.s32.totalorder %s21, 0
      %s214 = scalar_select %p213, %s21, 0
      %s215 = smul.addr %s212, 3
      %s216 = sadd.s32 %s214, %s215
      %s217 = smul.addr %s216, 8
      %s218 = scalar_lea.vmem %s4, %s217
      %p219 = scmp.eq.s32.totalorder %s21, 0
      // Predicated region
      $region37: #{tpu_custom_call.1} parent=35 // pred_check
        %p220 = pneg %p219
      $region38: #{tpu_custom_call.1} parent=35 // pred_check_branch
        %222 = sbr.rel (%p220) target = $region40
      $region39: #{tpu_custom_call.1} parent=35 // pred_region
        %223 = vst [vmem:[#allocation2] sm:$0xff] 0.0
        %224 = vst [vmem:[#allocation2 + $0x8] sm:$0xff] 0.0
        %225 = vst [vmem:[#allocation2 + $0x10] sm:$0xff] 0.0
        %v226 = vld [vmem:[%s210] sm:$0xff]
        %v227 = vld [vmem:[%s210 + $0x8] sm:$0xff]
        %v228 = vld [vmem:[%s210 + $0x10] sm:$0xf]
        %229 = vst [vmem:[#allocation2] sm:$0xff] %v226
        %230 = vst [vmem:[#allocation2 + $0x8] sm:$0xff] %v227
        %231 = vst [vmem:[#allocation2 + $0x10] sm:$0xf] %v228
        %v232 = vlaneseq
        %v233 = vand.u32 %v232, 127
        %vm234 = vcmp.lt.s32.totalorder %v233, 64
        %v235 = vsel %vm234, 1, 0
        %v236 = vcvt.s32.f32 %v235
        %237 = vst [vmem:[#allocation2 + $0x14] sm:$0x1] %v236
        %v238 = vld [vmem:[#allocation2] sm:$0xff]
        %v239 = vld [vmem:[#allocation2 + $0x8] sm:$0xff]
        %v240 = vld [vmem:[#allocation2 + $0x10] sm:$0xff]
        %v241 = vld [vmem:[%s1] sm:$0xff]
        %v242 = vld [vmem:[%s1 + $0x8] sm:$0xff]
        %v243 = vld [vmem:[%s1 + $0x10] sm:$0xff]
        %vm244 = vcmask 195584
        %v246 = vsel %vm244, %v241, 0
        %v249 = vsel %vm244, %v242, 0
        %v252 = vsel %vm244, %v243, 0
        %254 = vmatprep.subr.mxu0 0.0
        %255 = vmatpush1.msra.mxu0 %v238
        %256 = vmatprep.subr.mxu0 0.0
        %257 = vmatpush1.msra.mxu0 %v239
        %258 = vmatprep.subr.mxu0 0.0
        %259 = vmatpush1.msra.mxu0 %v240
        %260 = vmatprep.subr.mxu0 0.0
        %261 = vmatpush1.msra.mxu0 0.0
        %262 = vmatprep.subr.mxu0 0.0
        %263 = vmatpush1.msra.mxu0 0.0
        %264 = vmatprep.subr.mxu0 0.0
        %265 = vmatpush1.msra.mxu0 0.0
        %266 = vmatprep.subr.mxu0 0.0
        %267 = vmatpush1.msra.mxu0 0.0
        %268 = vmatprep.subr.mxu0 0.0
        %269 = vmatpush1.msra.mxu0 0.0
        %270 = vmatprep.subr.mxu0 0.0
        %271 = vmatpush1.msra.mxu0 0.0
        %272 = vmatprep.subr.mxu0 0.0
        %273 = vmatpush1.msra.mxu0 0.0
        %274 = vmatprep.subr.mxu0 0.0
        %275 = vmatpush1.msra.mxu0 0.0
        %276 = vmatprep.subr.mxu0 0.0
        %277 = vmatpush1.msra.mxu0 0.0
        %278 = vmatprep.subr.mxu0 0.0
        %279 = vmatpush1.msra.mxu0 0.0
        %280 = vmatprep.subr.mxu0 0.0
        %281 = vmatpush1.msra.mxu0 0.0
        %282 = vmatprep.subr.mxu0 0.0
        %283 = vmatpush1.msra.mxu0 0.0
        %284 = vmatprep.subr.mxu0 0.0
        %285 = vmatpush1.msra.mxu0 0.0
        %286 = vmatprep.subr.mxu0 0.0
        %287 = vmatpush1.msra.mxu0 0.0
        %288 = vmatprep.subr.mxu0 0.0
        %289 = vmatpush1.msra.mxu0 0.0
        %290 = vmatprep.subr.mxu0 0.0
        %291 = vmatpush1.msra.mxu0 0.0
        %292 = vmatprep.subr.mxu0 0.0
        %293 = vmatpush1.msra.mxu0 0.0
        %294 = vmatprep.subr.mxu0 0.0
        %295 = vmatpush1.msra.mxu0 0.0
        %296 = vmatprep.subr.mxu0 0.0
        %297 = vmatpush1.msra.mxu0 0.0
        %298 = vmatprep.subr.mxu0 0.0
        %299 = vmatpush1.msra.mxu0 0.0
        %300 = vmatprep.subr.mxu0 0.0
        %301 = vmatpush1.msra.mxu0 0.0
        %302 = vmatprep.subr.mxu0 0.0
        %303 = vmatpush1.msra.mxu0 0.0
        %304 = vmatprep.subr.mxu0 0.0
        %305 = vmatpush1.msra.mxu0 0.0
        %306 = vmatprep.subr.mxu0 0.0
        %307 = vmatpush1.msra.mxu0 0.0
        %308 = vmatprep.subr.mxu0 0.0
        %309 = vmatpush1.msra.mxu0 0.0
        %310 = vmatprep.subr.mxu0 0.0
        %311 = vmatpush1.msra.mxu0 0.0
        %312 = vmatprep.subr.mxu0 0.0
        %313 = vmatpush1.msra.mxu0 0.0
        %314 = vmatprep.subr.mxu0 0.0
        %315 = vmatpush1.msra.mxu0 0.0
        %316 = vmatprep.subr.mxu0 0.0
        %317 = vmatpush1.msra.mxu0 0.0
        %318 = vmatprep.mubr.f32.mxu0 0.0
        %319 = vmatmul.mubr.f32.gmra.mrb[0].mxu0 %v246
        %v320 = vpop.f32.mrb[0].mxu0
        %v321 = vadd.f32 0.0, %v320
        %v322 = vpop.f32.mrb[0].mxu0
        %323 = vmatprep.mubr.f32.mxu0 0.0
        %324 = vmatmul.mubr.f32.gmra.mrb[0].mxu0 %v249
        %v325 = vpop.f32.mrb[0].mxu0
        %v326 = vadd.f32 0.0, %v325
        %v327 = vpop.f32.mrb[0].mxu0
        %328 = vmatprep.mubr.f32.mxu0 0.0
        %329 = vmatmul.mubr.f32.gmra.mrb[0].mxu0 %v252
        %v330 = vpop.f32.mrb[0].mxu0
        %v331 = vadd.f32 0.0, %v330
        %v332 = vpop.f32.mrb[0].mxu0
        %333 = vdwg.mxu0
        %334 = vst [vmem:[#allocation3] sm:$0xff] %v321
        %335 = vst [vmem:[#allocation3 + $0x8] sm:$0xff] %v326
        %336 = vst [vmem:[#allocation3 + $0x10] sm:$0xff] %v331
        %v337 = vld [vmem:[%s2] sm:$0xff]
        %v338 = vld [vmem:[%s2 + $0x8] sm:$0xff]
        %v339 = vld [vmem:[%s2 + $0x10] sm:$0xff]
        %v341 = vsel %vm244, %v337, 0
        %v344 = vsel %vm244, %v338, 0
        %v347 = vsel %vm244, %v339, 0
        %349 = vmatprep.subr.mxu0 0.0
        %350 = vmatpush1.msra.mxu0 %v238
        %351 = vmatprep.subr.mxu0 0.0
        %352 = vmatpush1.msra.mxu0 %v239
        %353 = vmatprep.subr.mxu0 0.0
        %354 = vmatpush1.msra.mxu0 %v240
        %355 = vmatprep.subr.mxu0 0.0
        %356 = vmatpush1.msra.mxu0 0.0
        %357 = vmatprep.subr.mxu0 0.0
        %358 = vmatpush1.msra.mxu0 0.0
        %359 = vmatprep.subr.mxu0 0.0
        %360 = vmatpush1.msra.mxu0 0.0
        %361 = vmatprep.subr.mxu0 0.0
        %362 = vmatpush1.msra.mxu0 0.0
        %363 = vmatprep.subr.mxu0 0.0
        %364 = vmatpush1.msra.mxu0 0.0
        %365 = vmatprep.subr.mxu0 0.0
        %366 = vmatpush1.msra.mxu0 0.0
        %367 = vmatprep.subr.mxu0 0.0
        %368 = vmatpush1.msra.mxu0 0.0
        %369 = vmatprep.subr.mxu0 0.0
        %370 = vmatpush1.msra.mxu0 0.0
        %371 = vmatprep.subr.mxu0 0.0
        %372 = vmatpush1.msra.mxu0 0.0
        %373 = vmatprep.subr.mxu0 0.0
        %374 = vmatpush1.msra.mxu0 0.0
        %375 = vmatprep.subr.mxu0 0.0
        %376 = vmatpush1.msra.mxu0 0.0
        %377 = vmatprep.subr.mxu0 0.0
        %378 = vmatpush1.msra.mxu0 0.0
        %379 = vmatprep.subr.mxu0 0.0
        %380 = vmatpush1.msra.mxu0 0.0
        %381 = vmatprep.subr.mxu0 0.0
        %382 = vmatpush1.msra.mxu0 0.0
        %383 = vmatprep.subr.mxu0 0.0
        %384 = vmatpush1.msra.mxu0 0.0
        %385 = vmatprep.subr.mxu0 0.0
        %386 = vmatpush1.msra.mxu0 0.0
        %387 = vmatprep.subr.mxu0 0.0
        %388 = vmatpush1.msra.mxu0 0.0
        %389 = vmatprep.subr.mxu0 0.0
        %390 = vmatpush1.msra.mxu0 0.0
        %391 = vmatprep.subr.mxu0 0.0
        %392 = vmatpush1.msra.mxu0 0.0
        %393 = vmatprep.subr.mxu0 0.0
        %394 = vmatpush1.msra.mxu0 0.0
        %395 = vmatprep.subr.mxu0 0.0
        %396 = vmatpush1.msra.mxu0 0.0
        %397 = vmatprep.subr.mxu0 0.0
        %398 = vmatpush1.msra.mxu0 0.0
        %399 = vmatprep.subr.mxu0 0.0
        %400 = vmatpush1.msra.mxu0 0.0
        %401 = vmatprep.subr.mxu0 0.0
        %402 = vmatpush1.msra.mxu0 0.0
        %403 = vmatprep.subr.mxu0 0.0
        %404 = vmatpush1.msra.mxu0 0.0
        %405 = vmatprep.subr.mxu0 0.0
        %406 = vmatpush1.msra.mxu0 0.0
        %407 = vmatprep.subr.mxu0 0.0
        %408 = vmatpush1.msra.mxu0 0.0
        %409 = vmatprep.subr.mxu0 0.0
        %410 = vmatpush1.msra.mxu0 0.0
        %411 = vmatprep.subr.mxu0 0.0
        %412 = vmatpush1.msra.mxu0 0.0
        %413 = vmatprep.mubr.f32.mxu0 0.0
        %414 = vmatmul.mubr.f32.gmra.mrb[0].mxu0 %v341
        %v415 = vpop.f32.mrb[0].mxu0
        %v416 = vadd.f32 0.0, %v415
        %v417 = vpop.f32.mrb[0].mxu0
        %418 = vmatprep.mubr.f32.mxu0 0.0
        %419 = vmatmul.mubr.f32.gmra.mrb[0].mxu0 %v344
        %v420 = vpop.f32.mrb[0].mxu0
        %v421 = vadd.f32 0.0, %v420
        %v422 = vpop.f32.mrb[0].mxu0
        %423 = vmatprep.mubr.f32.mxu0 0.0
        %424 = vmatmul.mubr.f32.gmra.mrb[0].mxu0 %v347
        %v425 = vpop.f32.mrb[0].mxu0
        %v426 = vadd.f32 0.0, %v425
        %v427 = vpop.f32.mrb[0].mxu0
        %428 = vdwg.mxu0
        %429 = vst [vmem:[#allocation4] sm:$0xff] %v416
        %430 = vst [vmem:[#allocation4 + $0x8] sm:$0xff] %v421
        %431 = vst [vmem:[#allocation4 + $0x10] sm:$0xff] %v426
      $region40: #{tpu_custom_call.1} parent=35 // pred_fallthru
        _
      %s432 = smul.u32 %s21, 128
      %s433 = sshra.s32 %s432, 7
      %s434 = sand.u32 %s432, 127
      %s435 = scalar_lea.vmem [#allocation2], %s433
      %v436 = vld [vmem:[%s435] sm:$0xff]
      %v437 = vld [vmem:[%s435 + $0x8] sm:$0xff]
      %v438 = vld [vmem:[%s435 + $0x10] sm:$0xff]
      %v439 = vld [vmem:[#allocation3] sm:$0xff]
      %v440 = vld [vmem:[#allocation3 + $0x8] sm:$0xff]
      %v441 = vld [vmem:[#allocation3 + $0x10] sm:$0xff]
      %442 = vxpose.xlu0.b32.start [1/16] %v436, 128
      %443 = vxpose.xlu0.b32.cont [2/16] %v437, 128
      %444 = vxpose.xlu0.b32.cont [3/16] %v438, 128
      %445 = vxpose.xlu0.b32.cont [4/16] 0.0, 128
      %446 = vxpose.xlu0.b32.cont [5/16] 0.0, 128
      %447 = vxpose.xlu0.b32.cont [6/16] 0.0, 128
      %448 = vxpose.xlu0.b32.cont [7/16] 0.0, 128
      %449 = vxpose.xlu0.b32.cont [8/16] 0.0, 128
      %450 = vxpose.xlu0.b32.cont [9/16] 0.0, 128
      %451 = vxpose.xlu0.b32.cont [10/16] 0.0, 128
      %452 = vxpose.xlu0.b32.cont [11/16] 0.0, 128
      %453 = vxpose.xlu0.b32.cont [12/16] 0.0, 128
      %454 = vxpose.xlu0.b32.cont [13/16] 0.0, 128
      %455 = vxpose.xlu0.b32.cont [14/16] 0.0, 128
      %456 = vxpose.xlu0.b32.cont [15/16] 0.0, 128
      %457 = vxpose.xlu0.b32.end [16/16] 0.0, 128
      %v458 = vpop.trf.xlu0
      %v459 = vpop.trf.xlu0
      %v460 = vpop.trf.xlu0
      %v461 = vpop.trf.xlu0
      %v462 = vpop.trf.xlu0
      %v463 = vpop.trf.xlu0
      %v464 = vpop.trf.xlu0
      %v465 = vpop.trf.xlu0
      %v466 = vpop.trf.xlu0
      %v467 = vpop.trf.xlu0
      %v468 = vpop.trf.xlu0
      %v469 = vpop.trf.xlu0
      %v470 = vpop.trf.xlu0
      %v471 = vpop.trf.xlu0
      %v472 = vpop.trf.xlu0
      %v473 = vpop.trf.xlu0
      %vm474 = vcmask 195584
      %v476 = vsel %vm474, %v458, 0
      %v479 = vsel %vm474, %v459, 0
      %v482 = vsel %vm474, %v460, 0
      %v485 = vsel %vm474, %v461, 0
      %v488 = vsel %vm474, %v462, 0
      %v491 = vsel %vm474, %v463, 0
      %v494 = vsel %vm474, %v464, 0
      %v497 = vsel %vm474, %v465, 0
      %v500 = vsel %vm474, %v466, 0
      %v503 = vsel %vm474, %v467, 0
      %v506 = vsel %vm474, %v468, 0
      %v509 = vsel %vm474, %v469, 0
      %v512 = vsel %vm474, %v470, 0
      %v515 = vsel %vm474, %v471, 0
      %v518 = vsel %vm474, %v472, 0
      %v521 = vsel %vm474, %v473, 0
      %523 = vmatprep.subr.mxu0 0.0
      %524 = vmatpush1.msra.mxu0 %v439
      %525 = vmatprep.subr.mxu0 0.0
      %526 = vmatpush1.msra.mxu0 %v440
      %527 = vmatprep.subr.mxu0 0.0
      %528 = vmatpush1.msra.mxu0 %v441
      %529 = vmatprep.subr.mxu0 0.0
      %530 = vmatpush1.msra.mxu0 0.0
      %531 = vmatprep.subr.mxu0 0.0
      %532 = vmatpush1.msra.mxu0 0.0
      %533 = vmatprep.subr.mxu0 0.0
      %534 = vmatpush1.msra.mxu0 0.0
      %535 = vmatprep.subr.mxu0 0.0
      %536 = vmatpush1.msra.mxu0 0.0
      %537 = vmatprep.subr.mxu0 0.0
      %538 = vmatpush1.msra.mxu0 0.0
      %539 = vmatprep.subr.mxu0 0.0
      %540 = vmatpush1.msra.mxu0 0.0
      %541 = vmatprep.subr.mxu0 0.0
      %542 = vmatpush1.msra.mxu0 0.0
      %543 = vmatprep.subr.mxu0 0.0
      %544 = vmatpush1.msra.mxu0 0.0
      %545 = vmatprep.subr.mxu0 0.0
      %546 = vmatpush1.msra.mxu0 0.0
      %547 = vmatprep.subr.mxu0 0.0
      %548 = vmatpush1.msra.mxu0 0.0
      %549 = vmatprep.subr.mxu0 0.0
      %550 = vmatpush1.msra.mxu0 0.0
      %551 = vmatprep.subr.mxu0 0.0
      %552 = vmatpush1.msra.mxu0 0.0
      %553 = vmatprep.subr.mxu0 0.0
      %554 = vmatpush1.msra.mxu0 0.0
      %555 = vmatprep.subr.mxu0 0.0
      %556 = vmatpush1.msra.mxu0 0.0
      %557 = vmatprep.subr.mxu0 0.0
      %558 = vmatpush1.msra.mxu0 0.0
      %559 = vmatprep.subr.mxu0 0.0
      %560 = vmatpush1.msra.mxu0 0.0
      %561 = vmatprep.subr.mxu0 0.0
      %562 = vmatpush1.msra.mxu0 0.0
      %563 = vmatprep.subr.mxu0 0.0
      %564 = vmatpush1.msra.mxu0 0.0
      %565 = vmatprep.subr.mxu0 0.0
      %566 = vmatpush1.msra.mxu0 0.0
      %567 = vmatprep.subr.mxu0 0.0
      %568 = vmatpush1.msra.mxu0 0.0
      %569 = vmatprep.subr.mxu0 0.0
      %570 = vmatpush1.msra.mxu0 0.0
      %571 = vmatprep.subr.mxu0 0.0
      %572 = vmatpush1.msra.mxu0 0.0
      %573 = vmatprep.subr.mxu0 0.0
      %574 = vmatpush1.msra.mxu0 0.0
      %575 = vmatprep.subr.mxu0 0.0
      %576 = vmatpush1.msra.mxu0 0.0
      %577 = vmatprep.subr.mxu0 0.0
      %578 = vmatpush1.msra.mxu0 0.0
      %579 = vmatprep.subr.mxu0 0.0
      %580 = vmatpush1.msra.mxu0 0.0
      %581 = vmatprep.subr.mxu0 0.0
      %582 = vmatpush1.msra.mxu0 0.0
      %583 = vmatprep.subr.mxu0 0.0
      %584 = vmatpush1.msra.mxu0 0.0
      %585 = vmatprep.subr.mxu0 0.0
      %586 = vmatpush1.msra.mxu0 0.0
      %587 = vmatprep.mubr.f32.mxu0 0.0
      %588 = vmatmul.mubr.f32.gmra.mrb[0].mxu0 %v476
      %v589 = vpop.f32.mrb[0].mxu0
      %v590 = vadd.f32 0.0, %v589
      %v591 = vpop.f32.mrb[0].mxu0
      %592 = vmatprep.mubr.f32.mxu0 0.0
      %593 = vmatmul.mubr.f32.gmra.mrb[0].mxu0 %v479
      %v594 = vpop.f32.mrb[0].mxu0
      %v595 = vadd.f32 0.0, %v594
      %v596 = vpop.f32.mrb[0].mxu0
      %597 = vmatprep.mubr.f32.mxu0 0.0
      %598 = vmatmul.mubr.f32.gmra.mrb[0].mxu0 %v482
      %v599 = vpop.f32.mrb[0].mxu0
      %v600 = vadd.f32 0.0, %v599
      %v601 = vpop.f32.mrb[0].mxu0
      %602 = vmatprep.mubr.f32.mxu0 0.0
      %603 = vmatmul.mubr.f32.gmra.mrb[0].mxu0 %v485
      %v604 = vpop.f32.mrb[0].mxu0
      %v605 = vadd.f32 0.0, %v604
      %v606 = vpop.f32.mrb[0].mxu0
      %607 = vmatprep.mubr.f32.mxu0 0.0
      %608 = vmatmul.mubr.f32.gmra.mrb[0].mxu0 %v488
      %v609 = vpop.f32.mrb[0].mxu0
      %v610 = vadd.f32 0.0, %v609
      %v611 = vpop.f32.mrb[0].mxu0
      %612 = vmatprep.mubr.f32.mxu0 0.0
      %613 = vmatmul.mubr.f32.gmra.mrb[0].mxu0 %v491
      %v614 = vpop.f32.mrb[0].mxu0
      %v615 = vadd.f32 0.0, %v614
      %v616 = vpop.f32.mrb[0].mxu0
      %617 = vmatprep.mubr.f32.mxu0 0.0
      %618 = vmatmul.mubr.f32.gmra.mrb[0].mxu0 %v494
      %v619 = vpop.f32.mrb[0].mxu0
      %v620 = vadd.f32 0.0, %v619
      %v621 = vpop.f32.mrb[0].mxu0
      %622 = vmatprep.mubr.f32.mxu0 0.0
      %623 = vmatmul.mubr.f32.gmra.mrb[0].mxu0 %v497
      %v624 = vpop.f32.mrb[0].mxu0
      %v625 = vadd.f32 0.0, %v624
      %v626 = vpop.f32.mrb[0].mxu0
      %627 = vmatprep.mubr.f32.mxu0 0.0
      %628 = vmatmul.mubr.f32.gmra.mrb[0].mxu0 %v500
      %v629 = vpop.f32.mrb[0].mxu0
      %v630 = vadd.f32 0.0, %v629
      %v631 = vpop.f32.mrb[0].mxu0
      %632 = vmatprep.mubr.f32.mxu0 0.0
      %633 = vmatmul.mubr.f32.gmra.mrb[0].mxu0 %v503
      %v634 = vpop.f32.mrb[0].mxu0
      %v635 = vadd.f32 0.0, %v634
      %v636 = vpop.f32.mrb[0].mxu0
      %637 = vmatprep.mubr.f32.mxu0 0.0
      %638 = vmatmul.mubr.f32.gmra.mrb[0].mxu0 %v506
      %v639 = vpop.f32.mrb[0].mxu0
      %v640 = vadd.f32 0.0, %v639
      %v641 = vpop.f32.mrb[0].mxu0
      %642 = vmatprep.mubr.f32.mxu0 0.0
      %643 = vmatmul.mubr.f32.gmra.mrb[0].mxu0 %v509
      %v644 = vpop.f32.mrb[0].mxu0
      %v645 = vadd.f32 0.0, %v644
      %v646 = vpop.f32.mrb[0].mxu0
      %647 = vmatprep.mubr.f32.mxu0 0.0
      %648 = vmatmul.mubr.f32.gmra.mrb[0].mxu0 %v512
      %v649 = vpop.f32.mrb[0].mxu0
      %v650 = vadd.f32 0.0, %v649
      %v651 = vpop.f32.mrb[0].mxu0
      %652 = vmatprep.mubr.f32.mxu0 0.0
      %653 = vmatmul.mubr.f32.gmra.mrb[0].mxu0 %v515
      %v654 = vpop.f32.mrb[0].mxu0
      %v655 = vadd.f32 0.0, %v654
      %v656 = vpop.f32.mrb[0].mxu0
      %657 = vmatprep.mubr.f32.mxu0 0.0
      %658 = vmatmul.mubr.f32.gmra.mrb[0].mxu0 %v518
      %v659 = vpop.f32.mrb[0].mxu0
      %v660 = vadd.f32 0.0, %v659
      %v661 = vpop.f32.mrb[0].mxu0
      %662 = vmatprep.mubr.f32.mxu0 0.0
      %663 = vmatmul.mubr.f32.gmra.mrb[0].mxu0 %v521
      %v664 = vpop.f32.mrb[0].mxu0
      %v665 = vadd.f32 0.0, %v664
      %v666 = vpop.f32.mrb[0].mxu0
      %667 = vdwg.mxu0
      %668 = vmax.xlane.f32.xlu0 %v590
      %v669 = vpop.xlane.xlu0 %668
      %670 = vmax.xlane.f32.xlu0 %v595
      %v671 = vpop.xlane.xlu0 %670
      %672 = vmax.xlane.f32.xlu0 %v600
      %v673 = vpop.xlane.xlu0 %672
      %674 = vmax.xlane.f32.xlu0 %v605
      %v675 = vpop.xlane.xlu0 %674
      %676 = vmax.xlane.f32.xlu0 %v610
      %v677 = vpop.xlane.xlu0 %676
      %678 = vmax.xlane.f32.xlu0 %v615
      %v679 = vpop.xlane.xlu0 %678
      %680 = vmax.xlane.f32.xlu0 %v620
      %v681 = vpop.xlane.xlu0 %680
      %682 = vmax.xlane.f32.xlu0 %v625
      %v683 = vpop.xlane.xlu0 %682
      %684 = vmax.xlane.f32.xlu0 %v630
      %v685 = vpop.xlane.xlu0 %684
      %686 = vmax.xlane.f32.xlu0 %v635
      %v687 = vpop.xlane.xlu0 %686
      %688 = vmax.xlane.f32.xlu0 %v640
      %v689 = vpop.xlane.xlu0 %688
      %690 = vmax.xlane.f32.xlu0 %v645
      %v691 = vpop.xlane.xlu0 %690
      %692 = vmax.xlane.f32.xlu0 %v650
      %v693 = vpop.xlane.xlu0 %692
      %694 = vmax.xlane.f32.xlu0 %v655
      %v695 = vpop.xlane.xlu0 %694
      %696 = vmax.xlane.f32.xlu0 %v660
      %v697 = vpop.xlane.xlu0 %696
      %698 = vmax.xlane.f32.xlu0 %v665
      %v699 = vpop.xlane.xlu0 %698
      %v700 = vsub.f32 %v590, %v669
      %v701 = vsub.f32 %v595, %v671
      %v702 = vsub.f32 %v600, %v673
      %v703 = vsub.f32 %v605, %v675
      %v704 = vsub.f32 %v610, %v677
      %v705 = vsub.f32 %v615, %v679
      %v706 = vsub.f32 %v620, %v681
      %v707 = vsub.f32 %v625, %v683
      %v708 = vsub.f32 %v630, %v685
      %v709 = vsub.f32 %v635, %v687
      %v710 = vsub.f32 %v640, %v689
      %v711 = vsub.f32 %v645, %v691
      %v712 = vsub.f32 %v650, %v693
      %v713 = vsub.f32 %v655, %v695
      %v714 = vsub.f32 %v660, %v697
      %v715 = vsub.f32 %v665, %v699
      %v716 = vmul.f32 %v700, 1.442695
      %v717 = vpow.pop %v716
      %v718 = vmul.f32 %v701, 1.442695
      %v719 = vpow.pop %v718
      %v720 = vmul.f32 %v702, 1.442695
      %v721 = vpow.pop %v720
      %v722 = vmul.f32 %v703, 1.442695
      %v723 = vpow.pop %v722
      %v724 = vmul.f32 %v704, 1.442695
      %v725 = vpow.pop %v724
      %v726 = vmul.f32 %v705, 1.442695
      %v727 = vpow.pop %v726
      %v728 = vmul.f32 %v706, 1.442695
      %v729 = vpow.pop %v728
      %v730 = vmul.f32 %v707, 1.442695
      %v731 = vpow.pop %v730
      %v732 = vmul.f32 %v708, 1.442695
      %v733 = vpow.pop %v732
      %v734 = vmul.f32 %v709, 1.442695
      %v735 = vpow.pop %v734
      %v736 = vmul.f32 %v710, 1.442695
      %v737 = vpow.pop %v736
      %v738 = vmul.f32 %v711, 1.442695
      %v739 = vpow.pop %v738
      %v740 = vmul.f32 %v712, 1.442695
      %v741 = vpow.pop %v740
      %v742 = vmul.f32 %v713, 1.442695
      %v743 = vpow.pop %v742
      %v744 = vmul.f32 %v714, 1.442695
      %v745 = vpow.pop %v744
      %v746 = vmul.f32 %v715, 1.442695
      %v747 = vpow.pop %v746
      %v748 = vld [vmem:[#allocation4] sm:$0xff]
      %v749 = vld [vmem:[#allocation4 + $0x8] sm:$0xff]
      %v750 = vld [vmem:[#allocation4 + $0x10] sm:$0xff]
      %751 = vmatprep.subr.mxu0 0.0
      %752 = vmatpush1.xpose.msra.mxu0 %v717
      %753 = vmatprep.subr.mxu0 0.0
      %754 = vmatpush1.xpose.msra.mxu0 %v719
      %755 = vmatprep.subr.mxu0 0.0
      %756 = vmatpush1.xpose.msra.mxu0 %v721
      %757 = vmatprep.subr.mxu0 0.0
      %758 = vmatpush1.xpose.msra.mxu0 %v723
      %759 = vmatprep.subr.mxu0 0.0
      %760 = vmatpush1.xpose.msra.mxu0 %v725
      %761 = vmatprep.subr.mxu0 0.0
      %762 = vmatpush1.xpose.msra.mxu0 %v727
      %763 = vmatprep.subr.mxu0 0.0
      %764 = vmatpush1.xpose.msra.mxu0 %v729
      %765 = vmatprep.subr.mxu0 0.0
      %766 = vmatpush1.xpose.msra.mxu0 %v731
      %767 = vmatprep.subr.mxu0 0.0
      %768 = vmatpush1.xpose.msra.mxu0 %v733
      %769 = vmatprep.subr.mxu0 0.0
      %770 = vmatpush1.xpose.msra.mxu0 %v735
      %771 = vmatprep.subr.mxu0 0.0
      %772 = vmatpush1.xpose.msra.mxu0 %v737
      %773 = vmatprep.subr.mxu0 0.0
      %774 = vmatpush1.xpose.msra.mxu0 %v739
      %775 = vmatprep.subr.mxu0 0.0
      %776 = vmatpush1.xpose.msra.mxu0 %v741
      %777 = vmatprep.subr.mxu0 0.0
      %778 = vmatpush1.xpose.msra.mxu0 %v743
      %779 = vmatprep.subr.mxu0 0.0
      %780 = vmatpush1.xpose.msra.mxu0 %v745
      %781 = vmatprep.subr.mxu0 0.0
      %782 = vmatpush1.xpose.msra.mxu0 %v747
      %783 = vmatprep.subr.mxu0 0.0
      %784 = vmatpush1.xpose.msra.mxu0 0.0
      %785 = vmatprep.subr.mxu0 0.0
      %786 = vmatpush1.xpose.msra.mxu0 0.0
      %787 = vmatprep.subr.mxu0 0.0
      %788 = vmatpush1.xpose.msra.mxu0 0.0
      %789 = vmatprep.subr.mxu0 0.0
      %790 = vmatpush1.xpose.msra.mxu0 0.0
      %791 = vmatprep.subr.mxu0 0.0
      %792 = vmatpush1.xpose.msra.mxu0 0.0
      %793 = vmatprep.subr.mxu0 0.0
      %794 = vmatpush1.xpose.msra.mxu0 0.0
      %795 = vmatprep.subr.mxu0 0.0
      %796 = vmatpush1.xpose.msra.mxu0 0.0
      %797 = vmatprep.subr.mxu0 0.0
      %798 = vmatpush1.xpose.msra.mxu0 0.0
      %799 = vmatprep.subr.mxu0 0.0
      %800 = vmatpush1.xpose.msra.mxu0 0.0
      %801 = vmatprep.subr.mxu0 0.0
      %802 = vmatpush1.xpose.msra.mxu0 0.0
      %803 = vmatprep.subr.mxu0 0.0
      %804 = vmatpush1.xpose.msra.mxu0 0.0
      %805 = vmatprep.subr.mxu0 0.0
      %806 = vmatpush1.xpose.msra.mxu0 0.0
      %807 = vmatprep.subr.mxu0 0.0
      %808 = vmatpush1.xpose.msra.mxu0 0.0
      %809 = vmatprep.subr.mxu0 0.0
      %810 = vmatpush1.xpose.msra.mxu0 0.0
      %811 = vmatprep.subr.mxu0 0.0
      %812 = vmatpush1.xpose.msra.mxu0 0.0
      %813 = vmatprep.subr.mxu0 0.0
      %814 = vmatpush1.xpose.msra.mxu0 0.0
      %815 = vmatprep.mubr.f32.mxu0 0.0
      %816 = vmatmul.mubr.f32.gmra.mrb[0].mxu0 %v748
      %v817 = vpop.f32.mrb[0].mxu0
      %v818 = vadd.f32 0.0, %v817
      %v819 = vpop.f32.mrb[0].mxu0
      %820 = vmatprep.mubr.f32.mxu0 0.0
      %821 = vmatmul.mubr.f32.gmra.mrb[0].mxu0 %v749
      %v822 = vpop.f32.mrb[0].mxu0
      %v823 = vadd.f32 0.0, %v822
      %v824 = vpop.f32.mrb[0].mxu0
      %825 = vmatprep.mubr.f32.mxu0 0.0
      %826 = vmatmul.mubr.f32.gmra.mrb[0].mxu0 %v750
      %v827 = vpop.f32.mrb[0].mxu0
      %v828 = vadd.f32 0.0, %v827
      %v829 = vpop.f32.mrb[0].mxu0
      %830 = vdwg.mxu0
      %v831 = vmax.f32 %v828, 1e-30
      %v832 = vrcp.pop %v831
      %s833 = scalar_lea.vmem %s210, %s433
      %v834 = vld [vmem:[%s833] sm:$0xff]
      %v835 = vld [vmem:[%s833 + $0x8] sm:$0xff]
      %v836 = vld [vmem:[%s833 + $0x10] sm:$0xf]
      %s837 = sld [smem:[#allocation5]]
      %v838 = vlaneseq
      %v839 = vshrl.u32 %v838, 7
      %v840 = vsub.s32 4, %v839
      %v841 = vrot.slane %v832, %v840
      %v842 = vmul.f32 %v818, %v841
      %v843 = vmul.f32 %v823, %v841
      %v844 = vmul.f32 %v828, %v841
      %v845 = vstv %s837
      %v846 = vmul.f32 %v845, %v842
      %v847 = vmul.f32 %v845, %v843
      %v848 = vmul.f32 %v845, %v844
      %v849 = vadd.f32 %v846, %v834
      %v850 = vadd.f32 %v847, %v835
      %v851 = vadd.f32 %v848, %v836
      %852 = vst [vmem:[%s218] sm:$0xff] %v849
      %853 = vst [vmem:[%s218 + $0x8] sm:$0xff] %v850
      %854 = vst [vmem:[%s218 + $0x10] sm:$0xf] %v851
      %p855 = scmp.lt.s32.totalorder %s20, 1
      %s856 = scalar_select %p855, %s20, 1
      %p857 = scmp.lt.s32.totalorder %s21, 0
      %s858 = scalar_select %p857, %s21, 0
      %s859 = smul.addr %s856, 3
      %s860 = sadd.s32 %s858, %s859
      %s861 = smul.addr %s860, 8
      %s862 = scalar_lea.vmem %s4, %s861
      // Predicated region
      $region41: #{tpu_custom_call.1} parent=35 // pred_check
        %p863 = pneg %p137
      $region42: #{tpu_custom_call.1} parent=35 // pred_check_branch
        %865 = sbr.rel (%p863) target = $region44
      $region43: #{tpu_custom_call.1} parent=35 // pred_region
        _
      $region44: #{tpu_custom_call.1} parent=35 // pred_fallthru
        _
    $region36: #{tpu_custom_call.1} parent=5 // pred_fallthru
      _
    %p866 = scmp.le.s32.totalorder 2, %s11
    // Predicated region
    $region45: #{tpu_custom_call.1} parent=5 // pred_check
      %p867 = pneg %p866
    $region46: #{tpu_custom_call.1} parent=5 // pred_check_branch
      %869 = sbr.rel (%p867) target = $region48
    $region47: #{tpu_custom_call.1} parent=5 // pred_region
      %s870 = ssub.s32 %s11, 2
      // Predicated region
      $region49: #{tpu_custom_call.1} parent=47 // pred_check
        %p871 = pneg %p143
      $region50: #{tpu_custom_call.1} parent=47 // pred_check_branch
        %873 = sbr.rel (%p871) target = $region52
      $region51: #{tpu_custom_call.1} parent=47 // pred_region
        %p874 = scmp.lt.s32.totalorder %s22, 1
        %s875 = scalar_select %p874, %s22, 1
        %p876 = scmp.lt.s32.totalorder %s23, 0
        %s877 = scalar_select %p876, %s23, 0
        %s878 = smul.addr %s875, 3
        %s879 = sadd.s32 %s877, %s878
        %s880 = smul.addr %s879, 8
        %s881 = scalar_lea.vmem %s4, %s880
      $region52: #{tpu_custom_call.1} parent=47 // pred_fallthru
        _
    $region48: #{tpu_custom_call.1} parent=5 // pred_fallthru
      _
  $region6: #{tpu_custom_call.1} parent=0 // loop_footer
    %s15 = sadd.s32 1, %s11
  $region7: #{tpu_custom_call.1} parent=0 // loop_footer_branch
    %10 = sbr.rel target = $region3
  $region8: #{tpu_custom_call.1} parent=0 // loop_exit
    _

</llo_original>
